<compile_context>
chip_gen: v5e
topology: v5e:2x2
jax: 0.10.0
libtpu: 0.0.40
codegen_flags: <defaults>
</compile_context>

<pallas_src>
import jax
import jax.numpy as jnp
from jax.experimental import pallas as pl
from jax.experimental.pallas import tpu as pltpu


# ----------------------------- Pallas kernel ---------------------------------

def _wavelet_matmul_kernel(w_ref, x_ref, o_ref):
    # w_ref: (12, 12)  permuted block-diagonal weight (rows = output channels)
    # x_ref: (12, TM)  patch-major input tile, lane dim = pixels (dense)
    # o_ref: (12, TM)  output tile, already in flattened-NCHW layout
    o_ref[...] = jnp.dot(
        w_ref[...], x_ref[...], preferred_element_type=jnp.float32
    ).astype(o_ref.dtype)


def _pallas_wavelet_matmul(wt, xt, *, tm_max=8192):
    """Computes Y[n] = wt @ xt[n] for every batch element, tiled over pixels."""
    N, K, M = xt.shape
    NC = wt.shape[0]

    # Big lane tiles: each (12, 8192) f32 tile is only 384 KiB, so double-
    # buffered in+out buffers stay far below the scoped VMEM limit on
    # v5e/v6e (128 MiB) and v7x (64 MiB), while amortizing the ~0.35 us/step
    # pipeline overhead.
    tm = min(tm_max, M)
    if tm < M:
        tm = max(128, (tm // 128) * 128)  # tiled blocks must be lane-aligned
    grid_m = pl.cdiv(M, tm)
    # Give the v7x megacore (2 TensorCores) something to split when N == 1.
    if N == 1 and grid_m == 1 and M >= 256 and M % 256 == 0:
        tm = M // 2
        grid_m = 2

    bytes_accessed = (
        2 * N * K * M * xt.dtype.itemsize + NC * K * wt.dtype.itemsize
    )

    return pl.pallas_call(
        _wavelet_matmul_kernel,
        out_shape=jax.ShapeDtypeStruct((N, NC, M), xt.dtype),
        grid_spec=pltpu.PrefetchScalarGridSpec(
            num_scalar_prefetch=0,
            grid=(N, grid_m),
            in_specs=[
                # 12x12 weight: constant block index -> fetched once, resident.
                pl.BlockSpec((NC, K), lambda n, i: (0, 0)),
                # input tile: (12, tm), lane dim = pixels.
                pl.BlockSpec((None, K, tm), lambda n, i: (n, 0, i)),
            ],
            out_specs=pl.BlockSpec((None, NC, tm), lambda n, i: (n, 0, i)),
        ),
        compiler_params=pltpu.CompilerParams(
            dimension_semantics=("parallel", "parallel"),
        ),
        cost_estimate=pl.CostEstimate(
            flops=2 * N * NC * K * M,
            transcendentals=0,
            bytes_accessed=bytes_accessed,
        ),
    )(wt, xt)


# ------------------------------- wrapper --------------------------------------

def wavelet_transform_dec(x, weight, *, scale=1, transpose=True, tm_max=8192):
    """Forward of WaveletTransform with dec=True.

    x:      (N, 3, H, W) float32 (NCHW, PyTorch convention)
    weight: (3*ks*ks, 1, ks, ks) float32 -- grouped Conv2d weight (OIHW, groups=3)
    returns (N, 3*ks*ks, H//ks, W//ks) float32
    """
    ks = int(2 ** scale)
    kk = ks * ks
    nc = 3 * kk

    N, C, H, W = x.shape
    assert C == 3, "WaveletTransform expects 3 input channels"
    Ho, Wo = H // ks, W // ks
    M = Ho * Wo
    if H != Ho * ks or W != Wo * ks:           # conv with stride=ks drops remainder
        x = x[:, :, : Ho * ks, : Wo * ks]

    # --- glue: patch-major / channel-major input (single XLA repack pass) -----
    # TODO(synk): this last HBM pass could be fused into the kernel, but a
    # stride-ks gather along the lane (W) dim has no reliable Mosaic lowering,
    # so the repack stays in XLA; the kernel output needs no post-processing.
    xt = (
        x.reshape(N, C, Ho, ks, Wo, ks)
         .transpose(0, 1, 3, 5, 2, 4)          # (N, C, kh, kw, Ho, Wo)
         .reshape(N, nc, M)
    )

    # --- tiny (12,12) block-diagonal weight, channel permutation folded into rows
    # Wt[o, c*kk + p] = weight[old_o, 0, p] iff c == group(old_o), else 0,
    # where (with transpose=True) new channel o = k*3 + c <- old channel c*kk + k.
    wflat = weight.reshape(nc, kk)             # (old_out_channel, kh*ks+kw)
    o = jnp.arange(nc)
    if transpose:
        c = o % 3
        k = o // 3
    else:
        c = o // kk
        k = o % kk
    old_o = c * kk + k
    wt = jnp.zeros((nc, 3, kk), dtype=weight.dtype)
    wt = wt.at[o, c, :].set(wflat[old_o])      # row o only sees input channel c
    wt = wt.reshape(nc, nc)

    # --- hot path: lane-dense Pallas matmul; output is already NCHW ----------
    y = _pallas_wavelet_matmul(wt, xt, tm_max=tm_max)   # (N, nc, Ho*Wo)
    return y.reshape(N, nc, Ho, Wo)                     # free reshape


# ------------------------------ reference -------------------------------------

def _reference(x, weight, scale=1, transpose=True):
    ks = int(2 ** scale)
    out = jax.lax.conv_general_dilated(
        x, weight,
        window_strides=(ks, ks), padding="VALID",
        dimension_numbers=("NCHW", "OIHW", "NCHW"),
        feature_group_count=3,
    )
    if transpose:
        n, c, h, w = out.shape
        out = (
            out.reshape(n, 3, c // 3, h, w)
               .transpose(0, 2, 1, 3, 4)
               .reshape(n, c, h, w)
        )
    return out


# --------------------------------- main ----------------------------------------

if __name__ == "__main__":
    scale = 1
    ks = int(2 ** scale)
    nc = 3 * ks * ks

    key = jax.random.PRNGKey(0)
    kx, kw = jax.random.split(key)

    # Deterministic synthetic weight (the pickle file is replaced by random init).
    x = jax.random.normal(kx, (2, 3, 16, 16), dtype=jnp.float32)
    weight = jax.random.normal(kw, (nc, 1, ks, ks), dtype=jnp.float32) * 0.5

    out = wavelet_transform_dec(x, weight, scale=scale, transpose=True)
    out = jax.block_until_ready(out)

    ref = _reference(x, weight, scale=scale, transpose=True)
    assert out.shape == ref.shape == (2, nc, 8, 8), (out.shape, ref.shape)
    assert jnp.allclose(out, ref, atol=1e-5, rtol=1e-5), float(
        jnp.max(jnp.abs(out - ref))
    )

    # Secondary check exercising the multi-tile pixel grid (N=1, 2 tiles of 512).
    x2 = jax.random.normal(kx, (1, 3, 64, 64), dtype=jnp.float32)
    out2 = jax.block_until_ready(
        wavelet_transform_dec(x2, weight, scale=scale, transpose=True, tm_max=512)
    )
    ref2 = _reference(x2, weight, scale=scale, transpose=True)
    assert jnp.allclose(out2, ref2, atol=1e-5, rtol=1e-5), float(
        jnp.max(jnp.abs(out2 - ref2))
    )

    print("KERNEL_OK")
</pallas_src>

<mosaic_0001>
module attributes {stable_mosaic.version = 11 : i64} {
  func.func @_wavelet_matmul_kernel(%arg0: i32, %arg1: i32, %arg2: memref<12x12xf32, #tpu.memory_space<vmem>>, %arg3: memref<1x12x64xf32, #tpu.memory_space<vmem>>, %arg4: memref<1x12x64xf32, #tpu.memory_space<vmem>>) attributes {dimension_semantics = [#tpu.dimension_semantics<parallel>, #tpu.dimension_semantics<parallel>], iteration_bounds = array<i64: 2, 1>, scalar_prefetch = 0 : i64, scratch_operands = 0 : i64, tpu.core_type = #tpu.core_type<tc>, window_params = [{pipeline_mode = #tpu.pipeline_mode<synchronous>, transform_indices = @transform_0, window_bounds = array<i64: 12, 12>}, {transform_indices = @transform_1, window_bounds = array<i64: 1, 12, 64>}, {transform_indices = @transform_2, window_bounds = array<i64: 1, 12, 64>}]} {
    %c0 = arith.constant 0 : index
    %c0_0 = arith.constant 0 : index
    %0 = vector.load %arg2[%c0, %c0_0] : memref<12x12xf32, #tpu.memory_space<vmem>>, vector<12x12xf32>
    %c0_1 = arith.constant 0 : index
    %c0_2 = arith.constant 0 : index
    %c0_3 = arith.constant 0 : index
    %1 = vector.load %arg3[%c0_1, %c0_2, %c0_3] : memref<1x12x64xf32, #tpu.memory_space<vmem>>, vector<1x12x64xf32>
    %2 = vector.shape_cast %1 : vector<1x12x64xf32> to vector<12x64xf32>
    %cst = arith.constant dense<0.000000e+00> : vector<12x64xf32>
    %3 = tpu.matmul %0, %2, %cst {dimension_numbers = #tpu.dot_dimension_numbers<[1], [0], [0], [1], [0, 0, 1, 1], [], []>} : vector<12x12xf32>, vector<12x64xf32>, vector<12x64xf32> -> vector<12x64xf32>
    %c0_4 = arith.constant 0 : index
    %c0_5 = arith.constant 0 : index
    %c0_6 = arith.constant 0 : index
    %4 = vector.load %arg4[%c0_4, %c0_5, %c0_6] : memref<1x12x64xf32, #tpu.memory_space<vmem>>, vector<1x12x64xf32>
    %5 = vector.shape_cast %4 : vector<1x12x64xf32> to vector<12x64xf32>
    %6 = vector.shape_cast %3 : vector<12x64xf32> to vector<1x12x64xf32>
    tpu.vector_store %arg4[%c0_4, %c0_5, %c0_6], %6 {strides = array<i32>} : memref<1x12x64xf32, #tpu.memory_space<vmem>>, vector<1x12x64xf32>,
    return
  }
  func.func @transform_0(%arg0: i32, %arg1: i32) -> (i32, i32) {
    %c0_i32 = arith.constant 0 : i32
    %c0_i32_0 = arith.constant 0 : i32
    %c0_i32_1 = arith.constant 0 : i32
    return %c0_i32, %c0_i32_0 : i32, i32
  }
  func.func @transform_1(%arg0: i32, %arg1: i32) -> (i32, i32, i32) {
    %c0_i32 = arith.constant 0 : i32
    %c0_i32_0 = arith.constant 0 : i32
    return %arg0, %c0_i32, %arg1 : i32, i32, i32
  }
  func.func @transform_2(%arg0: i32, %arg1: i32) -> (i32, i32, i32) {
    %c0_i32 = arith.constant 0 : i32
    %c0_i32_0 = arith.constant 0 : i32
    return %arg0, %c0_i32, %arg1 : i32, i32, i32
  }
}

</mosaic_0001>

<llo_original>
// kernel: tpu_custom_call.1
$region0: #{tpu_custom_call.1}
  #allocation0 [shape = 'u32[]', space=smem, size = 0x4, offset = 0x4, fixed_abs, tag = 'smem constant byte address 0x4 - core index']
  #allocation1 [shape = 'u32[72,128]{1,0:T(1,128)}', space=vmem, size = 0x9000, scoped, tag = 'internal scratch']
  %s0 = inlined_call_operand.vmem [shape: f32[12,12], index: 0, kind: input, shape index: {}]
  %s1 = inlined_call_operand.vmem [shape: f32[2,12,64], index: 1, kind: input, shape index: {}]
  %s2 = inlined_call_operand.vmem [shape: f32[2,12,64], index: 2, kind: output, shape index: {}]
  %s3 = sld [smem:[#allocation0]]
  $region41: #{tpu_custom_call.1} parent=0
    _
  %s5 = ssub.s32 1, %s3
  %s6 = scalar_select 0, %s5, %s3
  loop: start=0, step=1, limit=4
  $region2: #{tpu_custom_call.1} parent=0 // loop_pre_header
    _
  $region3: #{tpu_custom_call.1} parent=0 // loop_header
    %s8 = sphi 0, %s12
    %p9 = scmp.ge.s32.totalorder %s8, 4
    %s15 = sphi 0, %s27
    %s16 = sphi 0, %s23
    %s17 = sphi 0, %s15
    %s18 = sphi 0, %s16
    %s19 = sphi 0, %s17
    %s20 = sphi 0, %s18
    %s28 = sphi 0, %s28
    %s30 = sphi 0, %s28
    %s31 = sphi 0, %s30
    %s45 = sphi 0, %s31
    %s53 = sphi 0, %s55
    %s56 = sphi 0, %s53
    %s57 = sphi 0, %s56
    %s73 = sphi 0, %s57
    %s81 = sphi 0, %s83
    %s84 = sphi 0, %s81
    %s85 = sphi 0, %s84
    %s101 = sphi 0, %s85
  $region4: #{tpu_custom_call.1} parent=0 // loop_header_branch
    %11 = sbr.rel (%p9) target = $region8
  $region5: #{tpu_custom_call.1} parent=0 // loop_body
    %s13 = ssub.s32 %s8, 1
    %s14 = ssub.s32 %s8, 2
    %s21 = sadd.s32 1, %s16
    %p22 = scmp.ge.s32.totalorder %s21, 1
    %s23 = scalar_select %p22, 0, %s21
    %s24 = sadd.s32 1, %s15
    %s25 = scalar_select %p22, %s24, %s15
    %p26 = scmp.ge.s32.totalorder %s25, 2
    %s27 = scalar_select %p26, 0, %s25
    %s29 = sadd.s32 %s28, 1
    %p32 = scmp.eq.s32.totalorder %s8, 1
    %p33 = scmp.ne.s32.totalorder %s28, %s30
    %p34 = scmp.eq.s32.totalorder %s8, 0
    %p35 = por %p33, %p34
    %p36 = scmp.ne.s32.totalorder %s28, %s30
    %p37 = scmp.eq.s32.totalorder %s13, 1
    %p38 = por %p36, %p37
    %p39 = scmp.ne.s32.totalorder %s30, %s31
    %p40 = scmp.eq.s32.totalorder %s13, 0
    %p41 = por %p39, %p40
    %p42 = scmp.ne.s32.totalorder %s30, %s31
    %p43 = scmp.eq.s32.totalorder %s14, 1
    %p44 = por %p42, %p43
    %p46 = scmp.ne.s32.totalorder %s31, %s45
    %p47 = scmp.eq.s32.totalorder %s14, 0
    %p48 = por %p46, %p47
    %s49 = ssub.s32 %s15, %s27
    %s50 = ssub.s32 %s16, %s23
    %s51 = sor.u32 %s49, %s50
    %p52 = scmp.eq.s32.totalorder %s51, 0
    %s54 = sadd.s32 %s53, 1
    %s55 = scalar_select %p52, %s53, %s54
    %p58 = pneg %p52
    %p59 = scmp.eq.s32.totalorder %s8, 1
    %p60 = por %p58, %p59
    %p61 = scmp.ne.s32.totalorder %s53, %s56
    %p62 = scmp.eq.s32.totalorder %s8, 0
    %p63 = por %p61, %p62
    %p64 = scmp.ne.s32.totalorder %s53, %s56
    %p65 = scmp.eq.s32.totalorder %s13, 1
    %p66 = por %p64, %p65
    %p67 = scmp.ne.s32.totalorder %s56, %s57
    %p68 = scmp.eq.s32.totalorder %s13, 0
    %p69 = por %p67, %p68
    %p70 = scmp.ne.s32.totalorder %s56, %s57
    %p71 = scmp.eq.s32.totalorder %s14, 1
    %p72 = por %p70, %p71
    %p74 = scmp.ne.s32.totalorder %s57, %s73
    %p75 = scmp.eq.s32.totalorder %s14, 0
    %p76 = por %p74, %p75
    %s77 = ssub.s32 %s15, %s27
    %s78 = ssub.s32 %s16, %s23
    %s79 = sor.u32 %s77, %s78
    %p80 = scmp.eq.s32.totalorder %s79, 0
    %s82 = sadd.s32 %s81, 1
    %s83 = scalar_select %p80, %s81, %s82
    %p86 = pneg %p80
    %p87 = scmp.eq.s32.totalorder %s8, 1
    %p88 = por %p86, %p87
    %p89 = scmp.ne.s32.totalorder %s81, %s84
    %p90 = scmp.eq.s32.totalorder %s8, 0
    %p91 = por %p89, %p90
    %p92 = scmp.ne.s32.totalorder %s81, %s84
    %p93 = scmp.eq.s32.totalorder %s13, 1
    %p94 = por %p92, %p93
    %p95 = scmp.ne.s32.totalorder %s84, %s85
    %p96 = scmp.eq.s32.totalorder %s13, 0
    %p97 = por %p95, %p96
    %p98 = scmp.ne.s32.totalorder %s84, %s85
    %p99 = scmp.eq.s32.totalorder %s14, 1
    %p100 = por %p98, %p99
    %p102 = scmp.ne.s32.totalorder %s85, %s101
    %p103 = scmp.eq.s32.totalorder %s14, 0
    %p104 = por %p102, %p103
    %p105 = scmp.le.s32.totalorder 1, %s8
    %p106 = scmp.lt.s32.totalorder %s8, 3
    %p107 = pnand %p105, %p106
    %p108 = pneg %p107
    // Predicated region
    $region9: #{tpu_custom_call.1} parent=5 // pred_check
      _
    $region10: #{tpu_custom_call.1} parent=5 // pred_check_branch
      %110 = sbr.rel (%p107) target = $region12
    $region11: #{tpu_custom_call.1} parent=5 // pred_region
      %s111 = ssub.s32 %s8, 1
      // Predicated region
      $region13: #{tpu_custom_call.1} parent=11 // pred_check
        %p112 = pneg %p41
      $region14: #{tpu_custom_call.1} parent=11 // pred_check_branch
        %114 = sbr.rel (%p112) target = $region16
      $region15: #{tpu_custom_call.1} parent=11 // pred_region
        _
      $region16: #{tpu_custom_call.1} parent=11 // pred_fallthru
        _
    $region12: #{tpu_custom_call.1} parent=5 // pred_fallthru
      _
    %p115 = scmp.lt.s32.totalorder %s8, 2
    // Predicated region
    $region17: #{tpu_custom_call.1} parent=5 // pred_check
      %p116 = pneg %p115
    $region18: #{tpu_custom_call.1} parent=5 // pred_check_branch
      %118 = sbr.rel (%p116) target = $region20
    $region19: #{tpu_custom_call.1} parent=5 // pred_region
      // Predicated region
      $region21: #{tpu_custom_call.1} parent=19 // pred_check
        %p119 = pneg %p63
      $region22: #{tpu_custom_call.1} parent=19 // pred_check_branch
        %121 = sbr.rel (%p119) target = $region24
      $region23: #{tpu_custom_call.1} parent=19 // pred_region
        %p122 = scmp.lt.s32.totalorder %s15, 1
        %s123 = scalar_select %p122, %s15, 1
        %p124 = scmp.lt.s32.totalorder %s16, 0
        %s125 = scalar_select %p124, %s16, 0
        %s126 = smul.addr %s123, 2
        %s127 = sadd.s32 %s125, %s126
        %s128 = smul.addr %s127, 8
        %s129 = scalar_lea.vmem %s1, %s128
      $region24: #{tpu_custom_call.1} parent=19 // pred_fallthru
        _
    $region20: #{tpu_custom_call.1} parent=5 // pred_fallthru
      _
    %p130 = scmp.le.s32.totalorder 1, %s8
    %p131 = scmp.lt.s32.totalorder %s8, 3
    %p132 = pnand %p130, %p131
    %p133 = pneg %p132
    // Predicated region
    $region25: #{tpu_custom_call.1} parent=5 // pred_check
      _
    $region26: #{tpu_custom_call.1} parent=5 // pred_check_branch
      %135 = sbr.rel (%p132) target = $region28
    $region27: #{tpu_custom_call.1} parent=5 // pred_region
      %s136 = ssub.s32 %s8, 1
      %p137 = pneg %p41
      %p138 = pneg %p38
      %p139 = scmp.lt.s32.totalorder %s17, 1
      %s140 = scalar_select %p139, %s17, 1
      %p141 = scmp.lt.s32.totalorder %s18, 0
      %s142 = scalar_select %p141, %s18, 0
      %s143 = smul.addr %s140, 2
      %s144 = sadd.s32 %s142, %s143
      %s145 = smul.addr %s144, 8
      %s146 = scalar_lea.vmem %s1, %s145
      %p147 = pneg %p69
      %p148 = pneg %p66
      %p149 = pneg %p97
      %p150 = pneg %p94
      %p151 = scmp.lt.s32.totalorder %s17, 1
      %s152 = scalar_select %p151, %s17, 1
      %p153 = scmp.lt.s32.totalorder %s18, 0
      %s154 = scalar_select %p153, %s18, 0
      %s155 = smul.addr %s152, 2
      %s156 = sadd.s32 %s154, %s155
      %s157 = smul.addr %s156, 8
      %s158 = scalar_lea.vmem %s2, %s157
      %p159 = scmp.lt.s32.totalorder %s17, 1
      %s160 = scalar_select %p159, %s17, 1
      %p161 = scmp.lt.s32.totalorder %s18, 0
      %s162 = scalar_select %p161, %s18, 0
      %s163 = smul.addr %s160, 2
      %s164 = sadd.s32 %s162, %s163
      %s165 = smul.addr %s164, 8
      %s166 = scalar_lea.vmem %s1, %s165
      %p167 = scmp.lt.s32.totalorder %s17, 1
      %s168 = scalar_select %p167, %s17, 1
      %p169 = scmp.lt.s32.totalorder %s18, 0
      %s170 = scalar_select %p169, %s18, 0
      %s171 = smul.addr %s168, 2
      %s172 = sadd.s32 %s170, %s171
      %s173 = smul.addr %s172, 8
      %s174 = scalar_lea.vmem %s2, %s173
      %v175 = vld [vmem:[%s0] sm:$0xff]
      %v176 = vld [vmem:[%s0 + $0x8] sm:$0xf]
      %v177 = vld [vmem:[%s166] sm:$0xff]
      %v178 = vld [vmem:[%s166 + $0x8] sm:$0xf]
      %vm179 = vcmask 97280
      %v181 = vsel %vm179, %v175, 0
      %v184 = vsel %vm179, %v176, 0
      %vm186 = vcmask 1043456
      %v188 = vsel %vm186, %v178, 0
      %190 = vmatpush.msra.mxu0 0.0
      %191 = vmatpush.msra.mxu0 0.0
      %192 = vmatpush.msra.mxu0 0.0
      %193 = vmatpush.msra.mxu0 0.0
      %194 = vmatpush.msra.mxu0 0.0
      %195 = vmatpush.msra.mxu0 0.0
      %196 = vmatpush.msra.mxu0 0.0
      %197 = vmatpush.msra.mxu0 0.0
      %198 = vmatpush.msra.mxu0 0.0
      %199 = vmatpush.msra.mxu0 0.0
      %200 = vmatpush.msra.mxu0 0.0
      %201 = vmatpush.msra.mxu0 0.0
      %202 = vmatpush.msra.mxu0 0.0
      %203 = vmatpush.msra.mxu0 0.0
      %204 = vmatpush.msra.mxu0 %v188
      %205 = vmatpush.msra.mxu0 %v177
      %206 = vmatmul.f32.gmra.mxu0 %v181
      %v207 = vpop.f32.mrf.mxu0
      %v208 = vadd.f32 0.0, %v207
      %209 = vmatmul.f32.gmra.mxu0 %v184
      %v210 = vpop.f32.mrf.mxu0
      %v211 = vadd.f32 0.0, %v210
      %212 = vdwg.mxu0
      %vm213 = vcmask 523264
      %214 = vst.msk [vmem:[%s174] sm:$0xff] %vm213, %v208
      %vm215 = vcmask 519168
      %216 = vst.msk [vmem:[%s174 + $0x8] sm:$0xf] %vm215, %v211
      %p217 = scmp.lt.s32.totalorder %s17, 1
      %s218 = scalar_select %p217, %s17, 1
      %p219 = scmp.lt.s32.totalorder %s18, 0
      %s220 = scalar_select %p219, %s18, 0
      %s221 = smul.addr %s218, 2
      %s222 = sadd.s32 %s220, %s221
      %s223 = smul.addr %s222, 8
      %s224 = scalar_lea.vmem %s2, %s223
      // Predicated region
      $region29: #{tpu_custom_call.1} parent=27 // pred_check
        %p225 = pneg %p94
      $region30: #{tpu_custom_call.1} parent=27 // pred_check_branch
        %227 = sbr.rel (%p225) target = $region32
      $region31: #{tpu_custom_call.1} parent=27 // pred_region
        _
      $region32: #{tpu_custom_call.1} parent=27 // pred_fallthru
        _
    $region28: #{tpu_custom_call.1} parent=5 // pred_fallthru
      _
    %p228 = scmp.le.s32.totalorder 2, %s8
    // Predicated region
    $region33: #{tpu_custom_call.1} parent=5 // pred_check
      %p229 = pneg %p228
    $region34: #{tpu_custom_call.1} parent=5 // pred_check_branch
      %231 = sbr.rel (%p229) target = $region36
    $region35: #{tpu_custom_call.1} parent=5 // pred_region
      %s232 = ssub.s32 %s8, 2
      // Predicated region
      $region37: #{tpu_custom_call.1} parent=35 // pred_check
        %p233 = pneg %p100
      $region38: #{tpu_custom_call.1} parent=35 // pred_check_branch
        %235 = sbr.rel (%p233) target = $region40
      $region39: #{tpu_custom_call.1} parent=35 // pred_region
        %p236 = scmp.lt.s32.totalorder %s19, 1
        %s237 = scalar_select %p236, %s19, 1
        %p238 = scmp.lt.s32.totalorder %s20, 0
        %s239 = scalar_select %p238, %s20, 0
        %s240 = smul.addr %s237, 2
        %s241 = sadd.s32 %s239, %s240
        %s242 = smul.addr %s241, 8
        %s243 = scalar_lea.vmem %s2, %s242
      $region40: #{tpu_custom_call.1} parent=35 // pred_fallthru
        _
    $region36: #{tpu_custom_call.1} parent=5 // pred_fallthru
      _
  $region6: #{tpu_custom_call.1} parent=0 // loop_footer
    %s12 = sadd.s32 1, %s8
  $region7: #{tpu_custom_call.1} parent=0 // loop_footer_branch
    %7 = sbr.rel target = $region3
  $region8: #{tpu_custom_call.1} parent=0 // loop_exit
    _

</llo_original>
